<compile_context>
chip_gen: v5e
topology: v5e:2x2
jax: 0.10.0
libtpu: 0.0.40
codegen_flags: <defaults>
</compile_context>

<pallas_src>
import functools

import jax
import jax.numpy as jnp
from jax.experimental import pallas as pl
from jax.experimental.pallas import tpu as pltpu

# -------------------- demo configuration (small shapes) --------------------
B, S = 2, 16            # batch, seq_len
H = 32                  # hidden_size
L = 16                  # latent_dim
I = 8                   # importance_dim
KN = L * I              # flattened (latent, importance) feature dim = 128
# KN == 128 is load-bearing for the lane-dense unmasked-store path.


def _round_up(x, m):
    return (x + m - 1) // m * m


# 0/1 expansion matrices, built once at module scope:
#   REP [l, l*I+i] = 1  -> base @ REP  repeats base along lanes (PyTorch l*I+i order)
#   TILE[i, l*I+i] = 1  -> z    @ TILE tiles the importance features along lanes
_LANE = jnp.arange(KN)
REP_MAT = (_LANE[None, :] // I == jnp.arange(L)[:, None]).astype(jnp.float32)   # [L, KN]
TILE_MAT = (_LANE[None, :] % I == jnp.arange(I)[:, None]).astype(jnp.float32)   # [I, KN]


# ===================== fused NoiseLayer kernel ====================
def _noise_kernel(x_ref, base_ref, w_full_ref, b_full_ref, rep_ref, out_ref):
    # Both Linears + TILE expansion were folded into W_full/b_full in the
    # wrapper, so this is a single lane-dense [TN,H]x[H,128] matmul.
    imp_tile = jax.nn.sigmoid(
        jnp.dot(x_ref[...], w_full_ref[...], preferred_element_type=jnp.float32)
        + b_full_ref[...])                                              # [TN, KN]
    # Lane-dense repeat of the base noise via a 0/1 MXU matmul (no slices,
    # concat or in-kernel reshape).
    base_rep = jnp.dot(base_ref[...], rep_ref[...],
                       preferred_element_type=jnp.float32)              # [TN, KN]
    out_ref[...] = (base_rep * imp_tile).astype(out_ref.dtype)          # [TN, KN]


# ===================== wrapper ====================
@functools.partial(jax.jit, static_argnames=("tile_rows", "out_dtype"))
def noise_layer_forward(params, input_states, noise_key, *,
                        tile_rows=1024, out_dtype=jnp.float32):
    """One NoiseLayer forward (memory_states=None, prev_noise=None)."""
    b, s, h = input_states.shape
    n = b * s
    x2 = input_states.reshape(n, h).astype(jnp.float32)

    # Base noise (first call: no alpha blending with prev_noise).
    base2 = jax.random.normal(noise_key, (n, L), dtype=jnp.float32)
    # TODO(synk): generating base noise in-kernel (pltpu.prng_seed/stateful_normal)
    # would remove one HBM write+read but no longer bit-matches jax.random.normal.

    # Fold hidden_proj, importance_proj and TILE into one [H, KN] matmul.
    # sigmoid commutes with TILE's column duplication, so this is exact modulo
    # fp32 rounding of the (tiny) weight product.
    w_full = (params["w_hid"] @ params["w_imp"]) @ TILE_MAT                     # [H, KN]
    b_full = (params["b_hid"] @ params["w_imp"] + params["b_imp"]) @ TILE_MAT   # [1, KN]

    # Row tiling: 8-row-aligned tiles, clamped to the (padded) token count.
    tn = min(tile_rows, _round_up(n, 8))
    n_pad = _round_up(n, tn)
    if n_pad != n:
        x2 = jnp.pad(x2, ((0, n_pad - n), (0, 0)))
        base2 = jnp.pad(base2, ((0, n_pad - n), (0, 0)))

    def row_spec(feat):
        return pl.BlockSpec((tn, feat), lambda i: (i, 0))

    def full_spec(shape):
        return pl.BlockSpec(shape, lambda i: (0, 0))

    noise_flat = pl.pallas_call(
        _noise_kernel,
        grid=(n_pad // tn,),
        in_specs=[row_spec(H), row_spec(L),
                  full_spec((H, KN)), full_spec((1, KN)), full_spec((L, KN))],
        out_specs=row_spec(KN),
        out_shape=jax.ShapeDtypeStruct((n_pad, KN), out_dtype),
        compiler_params=pltpu.CompilerParams(
            # embarrassingly parallel over rows -> lets v7x shard across 2 TCs
            dimension_semantics=("parallel",)),
    )(x2, base2, w_full, b_full, REP_MAT)

    # [N_pad, L*I] -> [B, S, L, I]  (plain XLA slice+reshape outside the kernel)
    return noise_flat[:n].reshape(b, s, L, I)
    # TODO(synk): prev_noise temporal blending across successive calls and the
    # optional memory_states gating branch are stateful / unused on the first
    # call and are not implemented.


# ===================== parameter init (deterministic, synthetic) =================
def _uniform(key, shape, fan_in):
    bound = 1.0 / (fan_in ** 0.5)
    return jax.random.uniform(key, shape, jnp.float32, -bound, bound)


def init_params(key):
    ks = jax.random.split(key, 4)
    return {
        # hidden_proj: Linear(H -> L); importance_proj: Linear(L -> I)
        "w_hid": _uniform(ks[0], (H, L), H), "b_hid": _uniform(ks[1], (1, L), H),
        "w_imp": _uniform(ks[2], (L, I), L), "b_imp": _uniform(ks[3], (1, I), L),
        # alpha / importance_space exist in the module but are unused here.
        "alpha": jnp.float32(0.7),
    }


# ===================== pure-JAX reference (for correctness check) ================
def _reference(params, input_states, base2):
    b, s, h = input_states.shape
    x2 = input_states.reshape(b * s, h)
    latent = x2 @ params["w_hid"] + params["b_hid"]
    imp = jax.nn.sigmoid(latent @ params["w_imp"] + params["b_imp"])
    shaped = base2[:, :, None] * imp[:, None, :]
    return shaped.reshape(b, s, L, I)


if __name__ == "__main__":
    key = jax.random.PRNGKey(0)
    kp, kx, kn = jax.random.split(key, 3)
    params = init_params(kp)
    x = jax.random.normal(kx, (B, S, H), dtype=jnp.float32)

    # f32-output run for a tight correctness check (the projection fold only
    # perturbs results at fp32-rounding level).
    out = noise_layer_forward(params, x, kn, out_dtype=jnp.float32)
    out = jax.block_until_ready(out)
    assert out.shape == (B, S, L, I)

    base2 = jax.random.normal(kn, (B * S, L), dtype=jnp.float32)
    ref = _reference(params, x, base2)
    assert jnp.allclose(out, ref, atol=1e-4, rtol=1e-4), "mismatch vs reference"

    # bf16-output run (recommended production setting for this HBM-bound kernel:
    # math stays f32 in-kernel, only the final store is bf16).
    out_bf16 = noise_layer_forward(params, x, kn, out_dtype=jnp.bfloat16)
    out_bf16 = jax.block_until_ready(out_bf16)
    assert out_bf16.dtype == jnp.bfloat16
    assert jnp.allclose(out_bf16.astype(jnp.float32), ref, atol=2e-2, rtol=2e-2), \
        "bf16 output mismatch vs reference"

    print("KERNEL_OK")
</pallas_src>

<mosaic_0001>
module attributes {stable_mosaic.version = 11 : i64} {
  func.func @_noise_kernel(%arg0: i32, %arg1: memref<32x32xf32, #tpu.memory_space<vmem>>, %arg2: memref<32x16xf32, #tpu.memory_space<vmem>>, %arg3: memref<32x128xf32, #tpu.memory_space<vmem>>, %arg4: memref<1x128xf32, #tpu.memory_space<vmem>>, %arg5: memref<16x128xf32, #tpu.memory_space<vmem>>, %arg6: memref<32x128xf32, #tpu.memory_space<vmem>>) attributes {dimension_semantics = [#tpu.dimension_semantics<parallel>], iteration_bounds = array<i64: 1>, scalar_prefetch = 0 : i64, scratch_operands = 0 : i64, tpu.core_type = #tpu.core_type<tc>, window_params = [{transform_indices = @transform_0, window_bounds = array<i64: 32, 32>}, {transform_indices = @transform_1, window_bounds = array<i64: 32, 16>}, {pipeline_mode = #tpu.pipeline_mode<synchronous>, transform_indices = @transform_2, window_bounds = array<i64: 32, 128>}, {pipeline_mode = #tpu.pipeline_mode<synchronous>, transform_indices = @transform_3, window_bounds = array<i64: 1, 128>}, {pipeline_mode = #tpu.pipeline_mode<synchronous>, transform_indices = @transform_4, window_bounds = array<i64: 16, 128>}, {transform_indices = @transform_5, window_bounds = array<i64: 32, 128>}]} {
    %c0 = arith.constant 0 : index
    %c0_0 = arith.constant 0 : index
    %0 = vector.load %arg1[%c0, %c0_0] : memref<32x32xf32, #tpu.memory_space<vmem>>, vector<32x32xf32>
    %c0_1 = arith.constant 0 : index
    %c0_2 = arith.constant 0 : index
    %1 = vector.load %arg3[%c0_1, %c0_2] : memref<32x128xf32, #tpu.memory_space<vmem>>, vector<32x128xf32>
    %cst = arith.constant dense<0.000000e+00> : vector<32x128xf32>
    %2 = tpu.matmul %0, %1, %cst {dimension_numbers = #tpu.dot_dimension_numbers<[1], [0], [0], [1], [0, 0, 1, 1], [], []>} : vector<32x32xf32>, vector<32x128xf32>, vector<32x128xf32> -> vector<32x128xf32>
    %c0_3 = arith.constant 0 : index
    %c0_4 = arith.constant 0 : index
    %3 = vector.load %arg4[%c0_3, %c0_4] : memref<1x128xf32, #tpu.memory_space<vmem>>, vector<1x128xf32>
    %4 = vector.broadcast %3 : vector<1x128xf32> to vector<32x128xf32>
    %5 = arith.addf %2, %4 : vector<32x128xf32>
    %6 = arith.negf %5 : vector<32x128xf32>
    %7 = math.exp %6 : vector<32x128xf32>
    %cst_5 = arith.constant 1.000000e+00 : f32
    %8 = vector.broadcast %cst_5 : f32 to vector<32x128xf32>
    %9 = arith.addf %8, %7 : vector<32x128xf32>
    %10 = arith.divf %8, %9 : vector<32x128xf32>
    %c0_6 = arith.constant 0 : index
    %c0_7 = arith.constant 0 : index
    %11 = vector.load %arg2[%c0_6, %c0_7] : memref<32x16xf32, #tpu.memory_space<vmem>>, vector<32x16xf32>
    %c0_8 = arith.constant 0 : index
    %c0_9 = arith.constant 0 : index
    %12 = vector.load %arg5[%c0_8, %c0_9] : memref<16x128xf32, #tpu.memory_space<vmem>>, vector<16x128xf32>
    %cst_10 = arith.constant dense<0.000000e+00> : vector<32x128xf32>
    %13 = tpu.matmul %11, %12, %cst_10 {dimension_numbers = #tpu.dot_dimension_numbers<[1], [0], [0], [1], [0, 0, 1, 1], [], []>} : vector<32x16xf32>, vector<16x128xf32>, vector<32x128xf32> -> vector<32x128xf32>
    %14 = arith.mulf %13, %10 : vector<32x128xf32>
    %c0_11 = arith.constant 0 : index
    %c0_12 = arith.constant 0 : index
    %15 = vector.load %arg6[%c0_11, %c0_12] : memref<32x128xf32, #tpu.memory_space<vmem>>, vector<32x128xf32>
    tpu.vector_store %arg6[%c0_11, %c0_12], %14 {strides = array<i32>} : memref<32x128xf32, #tpu.memory_space<vmem>>, vector<32x128xf32>,
    return
  }
  func.func @transform_0(%arg0: i32) -> (i32, i32) {
    %c0_i32 = arith.constant 0 : i32
    %c0_i32_0 = arith.constant 0 : i32
    return %arg0, %c0_i32 : i32, i32
  }
  func.func @transform_1(%arg0: i32) -> (i32, i32) {
    %c0_i32 = arith.constant 0 : i32
    %c0_i32_0 = arith.constant 0 : i32
    return %arg0, %c0_i32 : i32, i32
  }
  func.func @transform_2(%arg0: i32) -> (i32, i32) {
    %c0_i32 = arith.constant 0 : i32
    %c0_i32_0 = arith.constant 0 : i32
    %c0_i32_1 = arith.constant 0 : i32
    return %c0_i32, %c0_i32_0 : i32, i32
  }
  func.func @transform_3(%arg0: i32) -> (i32, i32) {
    %c0_i32 = arith.constant 0 : i32
    %c0_i32_0 = arith.constant 0 : i32
    %c0_i32_1 = arith.constant 0 : i32
    return %c0_i32, %c0_i32_0 : i32, i32
  }
  func.func @transform_4(%arg0: i32) -> (i32, i32) {
    %c0_i32 = arith.constant 0 : i32
    %c0_i32_0 = arith.constant 0 : i32
    %c0_i32_1 = arith.constant 0 : i32
    return %c0_i32, %c0_i32_0 : i32, i32
  }
  func.func @transform_5(%arg0: i32) -> (i32, i32) {
    %c0_i32 = arith.constant 0 : i32
    %c0_i32_0 = arith.constant 0 : i32
    return %arg0, %c0_i32 : i32, i32
  }
}

</mosaic_0001>

<llo_original>
// kernel: noise_layer_forward.1
$region0: #{noise_layer_forward.1}
  #allocation0 [shape = 'u32[]', space=smem, size = 0x4, offset = 0x4, fixed_abs, tag = 'smem constant byte address 0x4 - core index']
  #allocation1 [shape = 'u32[72,128]{1,0:T(1,128)}', space=vmem, size = 0x9000, scoped, tag = 'internal scratch']
  %s0 = inlined_call_operand.vmem [shape: f32[32,32], index: 0, kind: input, shape index: {}]
  %s1 = inlined_call_operand.vmem [shape: f32[32,16], index: 1, kind: input, shape index: {}]
  %s2 = inlined_call_operand.vmem [shape: f32[32,128], index: 2, kind: input, shape index: {}]
  %s3 = inlined_call_operand.vmem [shape: f32[1,128], index: 3, kind: input, shape index: {}]
  %s4 = inlined_call_operand.vmem [shape: f32[16,128], index: 4, kind: input, shape index: {}]
  %s5 = inlined_call_operand.vmem [shape: f32[32,128], index: 5, kind: output, shape index: {}]
  %s6 = sld [smem:[#allocation0]]
  $region30: #{noise_layer_forward.1} parent=0
    _
  %s8 = ssub.s32 1, %s6
  %s9 = scalar_select 0, %s8, %s6
  // Predicated region
  $region2: #{noise_layer_forward.1} parent=0 // pred_check
    _
  $region3: #{noise_layer_forward.1} parent=0 // pred_check_branch
    %11 = sbr.rel (0) target = $region5
  $region4: #{noise_layer_forward.1} parent=0 // pred_region
    _
  $region5: #{noise_layer_forward.1} parent=0 // pred_fallthru
    _
  // Predicated region
  $region6: #{noise_layer_forward.1} parent=0 // pred_check
    _
  $region7: #{noise_layer_forward.1} parent=0 // pred_check_branch
    %13 = sbr.rel (0) target = $region9
  $region8: #{noise_layer_forward.1} parent=0 // pred_region
    _
  $region9: #{noise_layer_forward.1} parent=0 // pred_fallthru
    _
  // Predicated region
  $region10: #{noise_layer_forward.1} parent=0 // pred_check
    _
  $region11: #{noise_layer_forward.1} parent=0 // pred_check_branch
    %15 = sbr.rel (0) target = $region13
  $region12: #{noise_layer_forward.1} parent=0 // pred_region
    _
  $region13: #{noise_layer_forward.1} parent=0 // pred_fallthru
    _
  // Predicated region
  $region14: #{noise_layer_forward.1} parent=0 // pred_check
    _
  $region15: #{noise_layer_forward.1} parent=0 // pred_check_branch
    %17 = sbr.rel (0) target = $region17
  $region16: #{noise_layer_forward.1} parent=0 // pred_region
    _
  $region17: #{noise_layer_forward.1} parent=0 // pred_fallthru
    _
  // Predicated region
  $region18: #{noise_layer_forward.1} parent=0 // pred_check
    _
  $region19: #{noise_layer_forward.1} parent=0 // pred_check_branch
    %19 = sbr.rel (0) target = $region21
  $region20: #{noise_layer_forward.1} parent=0 // pred_region
    _
  $region21: #{noise_layer_forward.1} parent=0 // pred_fallthru
    _
  %v20 = vld [vmem:[%s0] sm:$0xff]
  %v21 = vld [vmem:[%s0 + $0x8] sm:$0xff]
  %v22 = vld [vmem:[%s0 + $0x10] sm:$0xff]
  %v23 = vld [vmem:[%s0 + $0x18] sm:$0xff]
  %v24 = vld [vmem:[%s2] sm:$0xff]
  %v25 = vld [vmem:[%s2 + $0x8] sm:$0xff]
  %v26 = vld [vmem:[%s2 + $0x10] sm:$0xff]
  %v27 = vld [vmem:[%s2 + $0x18] sm:$0xff]
  %v28 = vld [vmem:[%s3] sm:$0x1]
  %v30 = vperm.slane %v28, 0
  %vm32 = vcmask 261120
  %v34 = vsel %vm32, %v20, 0
  %v37 = vsel %vm32, %v21, 0
  %v40 = vsel %vm32, %v22, 0
  %v43 = vsel %vm32, %v23, 0
  %45 = vmatpush.msra.mxu0 0.0
  %46 = vmatpush.msra.mxu0 0.0
  %47 = vmatpush.msra.mxu0 0.0
  %48 = vmatpush.msra.mxu0 0.0
  %49 = vmatpush.msra.mxu0 0.0
  %50 = vmatpush.msra.mxu0 0.0
  %51 = vmatpush.msra.mxu0 0.0
  %52 = vmatpush.msra.mxu0 0.0
  %53 = vmatpush.msra.mxu0 0.0
  %54 = vmatpush.msra.mxu0 0.0
  %55 = vmatpush.msra.mxu0 0.0
  %56 = vmatpush.msra.mxu0 0.0
  %57 = vmatpush.msra.mxu0 %v27
  %58 = vmatpush.msra.mxu0 %v26
  %59 = vmatpush.msra.mxu0 %v25
  %60 = vmatpush.msra.mxu0 %v24
  %61 = vmatmul.f32.gmra.mxu0 %v34
  %v62 = vpop.f32.mrf.mxu0
  %v63 = vadd.f32 %v30, %v62
  %64 = vmatmul.f32.gmra.mxu0 %v37
  %v65 = vpop.f32.mrf.mxu0
  %v66 = vadd.f32 %v30, %v65
  %67 = vmatmul.f32.gmra.mxu0 %v40
  %v68 = vpop.f32.mrf.mxu0
  %v69 = vadd.f32 %v30, %v68
  %70 = vmatmul.f32.gmra.mxu0 %v43
  %v71 = vpop.f32.mrf.mxu0
  %v72 = vadd.f32 %v30, %v71
  %73 = vdwg.mxu0
  %v74 = vxor.u32 %v63, 2147483648
  %v75 = vxor.u32 %v66, 2147483648
  %v76 = vxor.u32 %v69, 2147483648
  %v77 = vxor.u32 %v72, 2147483648
  %v78 = vmul.f32 %v74, 1.442695
  %v79 = vpow.pop %v78
  %v80 = vmul.f32 %v75, 1.442695
  %v81 = vpow.pop %v80
  %v82 = vmul.f32 %v76, 1.442695
  %v83 = vpow.pop %v82
  %v84 = vmul.f32 %v77, 1.442695
  %v85 = vpow.pop %v84
  %v86 = vadd.f32 %v79, 1.0
  %v87 = vadd.f32 %v81, 1.0
  %v88 = vadd.f32 %v83, 1.0
  %v89 = vadd.f32 %v85, 1.0
  %v90 = vrcp.pop %v86
  %v91 = vmul.f32 %v86, %v90
  %v92 = vsub.f32 1.0, %v91
  %v93 = vmul.f32 %v90, %v92
  %v94 = vadd.f32 %v90, %v93
  %vm95 = vweird.f32 %v86
  %vm96 = vweird.f32 %v90
  %vm97 = vmor %vm95, %vm96
  %v98 = vsel %vm97, %v90, %v94
  %v99 = vand.u32 2147483647, %v86
  %vm100 = vcmp.eq.f32.partialorder %v99, 8.507059e+37
  %v101 = vand.u32 %v86, 2147483648
  %v102 = vor.u32 1.1754944e-38, %v101
  %v103 = vsel %vm100, %v102, %v98
  %v104 = vmul.f32 1.0, %v103
  %v105 = vrcp.pop %v87
  %v106 = vmul.f32 %v87, %v105
  %v107 = vsub.f32 1.0, %v106
  %v108 = vmul.f32 %v105, %v107
  %v109 = vadd.f32 %v105, %v108
  %vm110 = vweird.f32 %v87
  %vm111 = vweird.f32 %v105
  %vm112 = vmor %vm110, %vm111
  %v113 = vsel %vm112, %v105, %v109
  %v114 = vand.u32 2147483647, %v87
  %vm115 = vcmp.eq.f32.partialorder %v114, 8.507059e+37
  %v116 = vand.u32 %v87, 2147483648
  %v117 = vor.u32 1.1754944e-38, %v116
  %v118 = vsel %vm115, %v117, %v113
  %v119 = vmul.f32 1.0, %v118
  %v120 = vrcp.pop %v88
  %v121 = vmul.f32 %v88, %v120
  %v122 = vsub.f32 1.0, %v121
  %v123 = vmul.f32 %v120, %v122
  %v124 = vadd.f32 %v120, %v123
  %vm125 = vweird.f32 %v88
  %vm126 = vweird.f32 %v120
  %vm127 = vmor %vm125, %vm126
  %v128 = vsel %vm127, %v120, %v124
  %v129 = vand.u32 2147483647, %v88
  %vm130 = vcmp.eq.f32.partialorder %v129, 8.507059e+37
  %v131 = vand.u32 %v88, 2147483648
  %v132 = vor.u32 1.1754944e-38, %v131
  %v133 = vsel %vm130, %v132, %v128
  %v134 = vmul.f32 1.0, %v133
  %v135 = vrcp.pop %v89
  %v136 = vmul.f32 %v89, %v135
  %v137 = vsub.f32 1.0, %v136
  %v138 = vmul.f32 %v135, %v137
  %v139 = vadd.f32 %v135, %v138
  %vm140 = vweird.f32 %v89
  %vm141 = vweird.f32 %v135
  %vm142 = vmor %vm140, %vm141
  %v143 = vsel %vm142, %v135, %v139
  %v144 = vand.u32 2147483647, %v89
  %vm145 = vcmp.eq.f32.partialorder %v144, 8.507059e+37
  %v146 = vand.u32 %v89, 2147483648
  %v147 = vor.u32 1.1754944e-38, %v146
  %v148 = vsel %vm145, %v147, %v143
  %v149 = vmul.f32 1.0, %v148
  %v150 = vld [vmem:[%s1] sm:$0xff]
  %v151 = vld [vmem:[%s1 + $0x8] sm:$0xff]
  %v152 = vld [vmem:[%s1 + $0x10] sm:$0xff]
  %v153 = vld [vmem:[%s1 + $0x18] sm:$0xff]
  %v154 = vld [vmem:[%s4] sm:$0xff]
  %v155 = vld [vmem:[%s4 + $0x8] sm:$0xff]
  %vm156 = vcmask 130048
  %v158 = vsel %vm156, %v150, 0
  %v161 = vsel %vm156, %v151, 0
  %v164 = vsel %vm156, %v152, 0
  %v167 = vsel %vm156, %v153, 0
  %169 = vmatpush.msra.mxu0 0.0
  %170 = vmatpush.msra.mxu0 0.0
  %171 = vmatpush.msra.mxu0 0.0
  %172 = vmatpush.msra.mxu0 0.0
  %173 = vmatpush.msra.mxu0 0.0
  %174 = vmatpush.msra.mxu0 0.0
  %175 = vmatpush.msra.mxu0 0.0
  %176 = vmatpush.msra.mxu0 0.0
  %177 = vmatpush.msra.mxu0 0.0
  %178 = vmatpush.msra.mxu0 0.0
  %179 = vmatpush.msra.mxu0 0.0
  %180 = vmatpush.msra.mxu0 0.0
  %181 = vmatpush.msra.mxu0 0.0
  %182 = vmatpush.msra.mxu0 0.0
  %183 = vmatpush.msra.mxu0 %v155
  %184 = vmatpush.msra.mxu0 %v154
  %185 = vmatmul.f32.gmra.mxu0 %v158
  %v186 = vpop.f32.mrf.mxu0
  %v187 = vadd.f32 0.0, %v186
  %188 = vmatmul.f32.gmra.mxu0 %v161
  %v189 = vpop.f32.mrf.mxu0
  %v190 = vadd.f32 0.0, %v189
  %191 = vmatmul.f32.gmra.mxu0 %v164
  %v192 = vpop.f32.mrf.mxu0
  %v193 = vadd.f32 0.0, %v192
  %194 = vmatmul.f32.gmra.mxu0 %v167
  %v195 = vpop.f32.mrf.mxu0
  %v196 = vadd.f32 0.0, %v195
  %197 = vdwg.mxu0
  %v198 = vmul.f32 %v187, %v104
  %v199 = vmul.f32 %v190, %v119
  %v200 = vmul.f32 %v193, %v134
  %v201 = vmul.f32 %v196, %v149
  %202 = vst [vmem:[%s5] sm:$0xff] %v198
  %203 = vst [vmem:[%s5 + $0x8] sm:$0xff] %v199
  %204 = vst [vmem:[%s5 + $0x10] sm:$0xff] %v200
  %205 = vst [vmem:[%s5 + $0x18] sm:$0xff] %v201
  // Predicated region
  $region22: #{noise_layer_forward.1} parent=0 // pred_check
    _
  $region23: #{noise_layer_forward.1} parent=0 // pred_check_branch
    %207 = sbr.rel (0) target = $region25
  $region24: #{noise_layer_forward.1} parent=0 // pred_region
    _
  $region25: #{noise_layer_forward.1} parent=0 // pred_fallthru
    _
  // Predicated region
  $region26: #{noise_layer_forward.1} parent=0 // pred_check
    _
  $region27: #{noise_layer_forward.1} parent=0 // pred_check_branch
    %209 = sbr.rel (0) target = $region29
  $region28: #{noise_layer_forward.1} parent=0 // pred_region
    _
  $region29: #{noise_layer_forward.1} parent=0 // pred_fallthru
    _

</llo_original>
